<compile_context>
chip_gen: v5e
topology: v5e:2x2
jax: 0.10.0
libtpu: 0.0.40
codegen_flags: <defaults>
</compile_context>

<pallas_src>
import jax
import jax.numpy as jnp
from jax.experimental import pallas as pl
from jax.experimental.pallas import tpu as pltpu


def _round_up(x, m):
    return (x + m - 1) // m * m


# ----------------------------------------------------------------------------
# Kernel
# ----------------------------------------------------------------------------
def _preprocess_block(x, scale, bias):
    """x / scale / bias: (rows, 128) f32 blocks over a flattened event stream.

    Global flat index of element (r, l) is block_off + r*128 + l with
    block_off % 3 == 0, so the log-feature predicate (flat % 3 == 2) can be
    evaluated from block-local indices.
    """
    rows, lanes = x.shape
    r = jax.lax.broadcasted_iota(jnp.int32, (rows, lanes), 0)
    l = jax.lax.broadcasted_iota(jnp.int32, (rows, lanes), 1)
    is_log = ((r * lanes + l) % 3) == 2
    # Guard non-log lanes so values <= -5 never feed jnp.log (matches reference
    # values; the guard only keeps the discarded branch finite).
    safe = jnp.where(is_log, x + 5.0, 1.0)
    xp = jnp.where(is_log, jnp.log(safe), x)
    return xp * scale + bias


def _preprocess_kernel(x9_ref, x3_ref, s9_ref, b9_ref, s3_ref, b3_ref,
                       o9_ref, o3_ref):
    o9_ref[...] = _preprocess_block(
        x9_ref[...], s9_ref[...], b9_ref[...]).astype(o9_ref.dtype)
    o3_ref[...] = _preprocess_block(
        x3_ref[...], s3_ref[...], b3_ref[...]).astype(o3_ref.dtype)


# ----------------------------------------------------------------------------
# Wrapper-side helpers (layout plumbing kept to flat views + optional tail pad)
# ----------------------------------------------------------------------------
def _flatten_to_rows(x, B_pad):
    """(B, k, 3) -> lane-dense (B_pad*k*3 // 128, 128); pads only if B != B_pad."""
    B = x.shape[0]
    per_evt = x.shape[1] * x.shape[2]
    flat = x.reshape(B * per_evt)
    if B_pad != B:
        flat = jnp.pad(flat, (0, (B_pad - B) * per_evt))
    return flat.reshape((B_pad * per_evt) // 128, 128)


def _rows_to_events(rows, B, k):
    flat = rows.reshape(-1)
    n = B * k * 3
    if flat.shape[0] != n:
        flat = flat[:n]
    return flat.reshape(B, k, 3)


def _affine_params(min_v, max_v):
    """Fold (x - min)/(max - min)*2 - 1 into x*scale + bias (per feature)."""
    mn = min_v.reshape(-1).astype(jnp.float32)
    mx = max_v.reshape(-1).astype(jnp.float32)
    inv = 1.0 / (mx - mn)
    scale = 2.0 * inv
    bias = -(2.0 * mn * inv + 1.0)
    return scale, bias


def _tile_params(scale, bias, rows):
    """Materialize per-element (rows, 128) slabs with the feature period."""
    period = scale.shape[0]
    idx = (jnp.arange(rows * 128, dtype=jnp.int32) % period).reshape(rows, 128)
    return scale[idx], bias[idx]


# ----------------------------------------------------------------------------
# Forward (direction=1) entry point
# ----------------------------------------------------------------------------
def preprocess_pallas(momenta, momenta_mother,
                      min_decay_prods, max_decay_prods,
                      min_mother, max_mother,
                      *, max_events_per_block=65536, out_dtype=jnp.float32):
    B = momenta.shape[0]
    assert momenta.shape == (B, 3, 3)
    assert momenta_mother.shape == (B, 1, 3)
    assert max_events_per_block % 128 == 0

    momenta = momenta.astype(jnp.float32)
    momenta_mother = momenta_mother.astype(jnp.float32)

    # Events per grid step: small-batch fast path caps it at round_up(B, 128).
    B_pad = _round_up(B, 128)
    E = min(B_pad, max_events_per_block)
    rows9_blk = (E * 9) // 128      # momenta rows per block
    rows3_blk = (E * 3) // 128      # mother rows per block
    n_blocks = pl.cdiv(B_pad, E)

    # Flat, lane-dense views of the two streams (no transpose, no concat).
    x9 = _flatten_to_rows(momenta, B_pad)            # (R9, 128)
    x3 = _flatten_to_rows(momenta_mother, B_pad)     # (R3, 128)
    R9, R3 = x9.shape[0], x3.shape[0]

    # Per-feature affine params -> per-block-element slabs (valid for every
    # block since block offsets are multiples of the 9-/3-feature period).
    s9, b9 = _affine_params(min_decay_prods, max_decay_prods)   # (9,)
    s3, b3 = _affine_params(min_mother, max_mother)             # (3,)
    s9_slab, b9_slab = _tile_params(s9, b9, rows9_blk)          # (rows9_blk,128)
    s3_slab, b3_slab = _tile_params(s3, b3, rows3_blk)          # (rows3_blk,128)

    data9_spec = pl.BlockSpec((rows9_blk, 128), lambda i: (i, 0))
    data3_spec = pl.BlockSpec((rows3_blk, 128), lambda i: (i, 0))
    par9_spec = pl.BlockSpec((rows9_blk, 128), lambda i: (0, 0))
    par3_spec = pl.BlockSpec((rows3_blk, 128), lambda i: (0, 0))

    out9, out3 = pl.pallas_call(
        _preprocess_kernel,
        out_shape=(jax.ShapeDtypeStruct((R9, 128), out_dtype),
                   jax.ShapeDtypeStruct((R3, 128), out_dtype)),
        grid=(n_blocks,),
        in_specs=[data9_spec, data3_spec,
                  par9_spec, par9_spec, par3_spec, par3_spec],
        out_specs=(data9_spec, data3_spec),
        compiler_params=pltpu.CompilerParams(
            dimension_semantics=("parallel",),
            vmem_limit_bytes=32 * 1024 * 1024),
    )(x9, x3, s9_slab, b9_slab, s3_slab, b3_slab)

    momenta_pp = _rows_to_events(out9, B, 3)
    momenta_mother_pp = _rows_to_events(out3, B, 1)
    return momenta_pp, momenta_mother_pp


# ----------------------------------------------------------------------------
# Deterministic parameter setup (mirrors get_limits_from_samples; plain JAX)
# ----------------------------------------------------------------------------
def get_limits_from_samples(sample, sample_mother):
    def min_func(x):
        x = jnp.min(x, axis=0, keepdims=True)
        return jnp.where(x < 0, x * 1.1, x * 0.9)

    def max_func(x):
        x = jnp.max(x, axis=0, keepdims=True)
        return jnp.where(x < 0, x * 0.9, x * 1.1)

    sample_copy = sample.at[:, :, 2].set(jnp.log(sample[:, :, 2] + 5.0))
    sample_mother_copy = sample_mother.at[:, :, 2].set(
        jnp.log(sample_mother[:, :, 2] + 5.0))
    return (min_func(sample_copy), max_func(sample_copy),
            min_func(sample_mother_copy), max_func(sample_mother_copy))


# Pure-JAX reference of the forward pass (direction=1) for verification.
def preprocess_ref(sample, sample_mother, min_d, max_d, min_m, max_m):
    s = sample.at[:, :, 2].set(jnp.log(sample[:, :, 2] + 5.0))
    s = (s - min_d) / (max_d - min_d) * 2.0 - 1.0
    sm = sample_mother.at[:, :, 2].set(jnp.log(sample_mother[:, :, 2] + 5.0))
    sm = (sm - min_m) / (max_m - min_m) * 2.0 - 1.0
    return s, sm


def _make_inputs(key, B):
    k1, k2, k3, k4 = jax.random.split(key, 4)
    # momenta: px, py in [-2, 2]; pz in [0.5, 8] (so log(pz+5) is valid)
    pxpy = jax.random.uniform(k1, (B, 3, 2), jnp.float32, -2.0, 2.0)
    pz = jax.random.uniform(k2, (B, 3, 1), jnp.float32, 0.5, 8.0)
    momenta = jnp.concatenate([pxpy, pz], axis=-1)
    mpxpy = jax.random.uniform(k3, (B, 1, 2), jnp.float32, -3.0, 3.0)
    mpz = jax.random.uniform(k4, (B, 1, 1), jnp.float32, 1.0, 20.0)
    momenta_mother = jnp.concatenate([mpxpy, mpz], axis=-1)
    return momenta, momenta_mother


if __name__ == "__main__":
    key = jax.random.PRNGKey(0)

    # Three small cases: aligned single block, unaligned (exercises tail pad),
    # and a multi-block grid (exercises the tiled path / megacore sharding).
    cases = [
        (256, {}),                                   # B*9 divisible by 128, 1 block
        (100, {}),                                   # pad path, 1 block
        (4096, {"max_events_per_block": 1024}),      # 4 grid blocks
    ]

    for B, kwargs in cases:
        key, sub = jax.random.split(key)
        momenta, momenta_mother = _make_inputs(sub, B)
        min_d, max_d, min_m, max_m = get_limits_from_samples(momenta,
                                                             momenta_mother)
        sample = {"momenta": momenta, "momenta_mother": momenta_mother}

        momenta_pp, momenta_mother_pp = preprocess_pallas(
            sample["momenta"], sample["momenta_mother"],
            min_d, max_d, min_m, max_m, **kwargs)
        out = {"momenta_pp": momenta_pp, "momenta_mother_pp": momenta_mother_pp}
        jax.block_until_ready(out)

        ref_pp, ref_mother_pp = preprocess_ref(momenta, momenta_mother,
                                               min_d, max_d, min_m, max_m)
        assert out["momenta_pp"].shape == (B, 3, 3)
        assert out["momenta_mother_pp"].shape == (B, 1, 3)
        assert jnp.allclose(out["momenta_pp"], ref_pp, atol=1e-5, rtol=1e-5)
        assert jnp.allclose(out["momenta_mother_pp"], ref_mother_pp,
                            atol=1e-5, rtol=1e-5)

    print("KERNEL_OK")
</pallas_src>

<mosaic_0001>
module attributes {stable_mosaic.version = 11 : i64} {
  func.func @_preprocess_kernel(%arg0: i32, %arg1: memref<18x128xf32, #tpu.memory_space<vmem>>, %arg2: memref<6x128xf32, #tpu.memory_space<vmem>>, %arg3: memref<18x128xf32, #tpu.memory_space<vmem>>, %arg4: memref<18x128xf32, #tpu.memory_space<vmem>>, %arg5: memref<6x128xf32, #tpu.memory_space<vmem>>, %arg6: memref<6x128xf32, #tpu.memory_space<vmem>>, %arg7: memref<18x128xf32, #tpu.memory_space<vmem>>, %arg8: memref<6x128xf32, #tpu.memory_space<vmem>>) attributes {dimension_semantics = [#tpu.dimension_semantics<parallel>], iteration_bounds = array<i64: 1>, scalar_prefetch = 0 : i64, scratch_operands = 0 : i64, tpu.core_type = #tpu.core_type<tc>, window_params = [{transform_indices = @transform_0, window_bounds = array<i64: 18, 128>}, {transform_indices = @transform_1, window_bounds = array<i64: 6, 128>}, {pipeline_mode = #tpu.pipeline_mode<synchronous>, transform_indices = @transform_2, window_bounds = array<i64: 18, 128>}, {pipeline_mode = #tpu.pipeline_mode<synchronous>, transform_indices = @transform_3, window_bounds = array<i64: 18, 128>}, {pipeline_mode = #tpu.pipeline_mode<synchronous>, transform_indices = @transform_4, window_bounds = array<i64: 6, 128>}, {pipeline_mode = #tpu.pipeline_mode<synchronous>, transform_indices = @transform_5, window_bounds = array<i64: 6, 128>}, {transform_indices = @transform_6, window_bounds = array<i64: 18, 128>}, {transform_indices = @transform_7, window_bounds = array<i64: 6, 128>}]} {
    %c0 = arith.constant 0 : index
    %c0_0 = arith.constant 0 : index
    %0 = vector.load %arg1[%c0, %c0_0] : memref<18x128xf32, #tpu.memory_space<vmem>>, vector<18x128xf32>
    %c0_1 = arith.constant 0 : index
    %c0_2 = arith.constant 0 : index
    %1 = vector.load %arg3[%c0_1, %c0_2] : memref<18x128xf32, #tpu.memory_space<vmem>>, vector<18x128xf32>
    %c0_3 = arith.constant 0 : index
    %c0_4 = arith.constant 0 : index
    %2 = vector.load %arg4[%c0_3, %c0_4] : memref<18x128xf32, #tpu.memory_space<vmem>>, vector<18x128xf32>
    %3 = tpu.iota {dimensions = array<i32: 0>} : vector<18x128xi32>
    %4 = tpu.iota {dimensions = array<i32: 1>} : vector<18x128xi32>
    %c128_i32 = arith.constant 128 : i32
    %5 = vector.broadcast %c128_i32 : i32 to vector<18x128xi32>
    %6 = arith.muli %3, %5 : vector<18x128xi32>
    %7 = arith.addi %6, %4 : vector<18x128xi32>
    %c3_i32 = arith.constant 3 : i32
    %c0_i32 = arith.constant 0 : i32
    %8 = arith.cmpi eq, %c3_i32, %c0_i32 : i32
    %c1_i32 = arith.constant 1 : i32
    %9 = arith.select %8, %c1_i32, %c3_i32 : i32
    %10 = vector.broadcast %9 : i32 to vector<18x128xi32>
    %11 = arith.remsi %7, %10 : vector<18x128xi32>
    %c0_i32_5 = arith.constant 0 : i32
    %12 = vector.broadcast %c0_i32_5 : i32 to vector<18x128xi32>
    %13 = arith.cmpi ne, %11, %12 : vector<18x128xi32>
    %c0_i32_6 = arith.constant 0 : i32
    %14 = vector.broadcast %c0_i32_6 : i32 to vector<18x128xi32>
    %15 = arith.cmpi slt, %11, %14 : vector<18x128xi32>
    %c0_i32_7 = arith.constant 0 : i32
    %16 = arith.cmpi slt, %9, %c0_i32_7 : i32
    %17 = vector.broadcast %16 : i1 to vector<18x128xi1>
    %18 = vector.broadcast %17 : vector<18x128xi1> to vector<18x128xi1>
    %19 = arith.xori %15, %18 : vector<18x128xi1>
    %20 = arith.andi %19, %13 : vector<18x128xi1>
    %21 = vector.broadcast %9 : i32 to vector<18x128xi32>
    %22 = arith.addi %11, %21 : vector<18x128xi32>
    %23 = arith.select %20, %22, %11 : vector<18x128xi1>, vector<18x128xi32>
    %c2_i32 = arith.constant 2 : i32
    %24 = vector.broadcast %c2_i32 : i32 to vector<18x128xi32>
    %25 = arith.cmpi eq, %23, %24 : vector<18x128xi32>
    %cst = arith.constant 5.000000e+00 : f32
    %26 = vector.broadcast %cst : f32 to vector<18x128xf32>
    %27 = arith.addf %0, %26 : vector<18x128xf32>
    %cst_8 = arith.constant 1.000000e+00 : f32
    %28 = vector.broadcast %cst_8 : f32 to vector<18x128xf32>
    %29 = arith.select %25, %27, %28 : vector<18x128xi1>, vector<18x128xf32>
    %30 = math.log %29 : vector<18x128xf32>
    %31 = arith.select %25, %30, %0 : vector<18x128xi1>, vector<18x128xf32>
    %32 = arith.mulf %31, %1 : vector<18x128xf32>
    %33 = arith.addf %32, %2 : vector<18x128xf32>
    %c0_9 = arith.constant 0 : index
    %c0_10 = arith.constant 0 : index
    %34 = vector.load %arg7[%c0_9, %c0_10] : memref<18x128xf32, #tpu.memory_space<vmem>>, vector<18x128xf32>
    tpu.vector_store %arg7[%c0_9, %c0_10], %33 {strides = array<i32>} : memref<18x128xf32, #tpu.memory_space<vmem>>, vector<18x128xf32>,
    %c0_11 = arith.constant 0 : index
    %c0_12 = arith.constant 0 : index
    %35 = vector.load %arg2[%c0_11, %c0_12] : memref<6x128xf32, #tpu.memory_space<vmem>>, vector<6x128xf32>
    %c0_13 = arith.constant 0 : index
    %c0_14 = arith.constant 0 : index
    %36 = vector.load %arg5[%c0_13, %c0_14] : memref<6x128xf32, #tpu.memory_space<vmem>>, vector<6x128xf32>
    %c0_15 = arith.constant 0 : index
    %c0_16 = arith.constant 0 : index
    %37 = vector.load %arg6[%c0_15, %c0_16] : memref<6x128xf32, #tpu.memory_space<vmem>>, vector<6x128xf32>
    %38 = tpu.iota {dimensions = array<i32: 0>} : vector<6x128xi32>
    %39 = tpu.iota {dimensions = array<i32: 1>} : vector<6x128xi32>
    %c128_i32_17 = arith.constant 128 : i32
    %40 = vector.broadcast %c128_i32_17 : i32 to vector<6x128xi32>
    %41 = arith.muli %38, %40 : vector<6x128xi32>
    %42 = arith.addi %41, %39 : vector<6x128xi32>
    %c3_i32_18 = arith.constant 3 : i32
    %c0_i32_19 = arith.constant 0 : i32
    %43 = arith.cmpi eq, %c3_i32_18, %c0_i32_19 : i32
    %c1_i32_20 = arith.constant 1 : i32
    %44 = arith.select %43, %c1_i32_20, %c3_i32_18 : i32
    %45 = vector.broadcast %44 : i32 to vector<6x128xi32>
    %46 = arith.remsi %42, %45 : vector<6x128xi32>
    %c0_i32_21 = arith.constant 0 : i32
    %47 = vector.broadcast %c0_i32_21 : i32 to vector<6x128xi32>
    %48 = arith.cmpi ne, %46, %47 : vector<6x128xi32>
    %c0_i32_22 = arith.constant 0 : i32
    %49 = vector.broadcast %c0_i32_22 : i32 to vector<6x128xi32>
    %50 = arith.cmpi slt, %46, %49 : vector<6x128xi32>
    %c0_i32_23 = arith.constant 0 : i32
    %51 = arith.cmpi slt, %44, %c0_i32_23 : i32
    %52 = vector.broadcast %51 : i1 to vector<6x128xi1>
    %53 = vector.broadcast %52 : vector<6x128xi1> to vector<6x128xi1>
    %54 = arith.xori %50, %53 : vector<6x128xi1>
    %55 = arith.andi %54, %48 : vector<6x128xi1>
    %56 = vector.broadcast %44 : i32 to vector<6x128xi32>
    %57 = arith.addi %46, %56 : vector<6x128xi32>
    %58 = arith.select %55, %57, %46 : vector<6x128xi1>, vector<6x128xi32>
    %c2_i32_24 = arith.constant 2 : i32
    %59 = vector.broadcast %c2_i32_24 : i32 to vector<6x128xi32>
    %60 = arith.cmpi eq, %58, %59 : vector<6x128xi32>
    %cst_25 = arith.constant 5.000000e+00 : f32
    %61 = vector.broadcast %cst_25 : f32 to vector<6x128xf32>
    %62 = arith.addf %35, %61 : vector<6x128xf32>
    %cst_26 = arith.constant 1.000000e+00 : f32
    %63 = vector.broadcast %cst_26 : f32 to vector<6x128xf32>
    %64 = arith.select %60, %62, %63 : vector<6x128xi1>, vector<6x128xf32>
    %65 = math.log %64 : vector<6x128xf32>
    %66 = arith.select %60, %65, %35 : vector<6x128xi1>, vector<6x128xf32>
    %67 = arith.mulf %66, %36 : vector<6x128xf32>
    %68 = arith.addf %67, %37 : vector<6x128xf32>
    %c0_27 = arith.constant 0 : index
    %c0_28 = arith.constant 0 : index
    %69 = vector.load %arg8[%c0_27, %c0_28] : memref<6x128xf32, #tpu.memory_space<vmem>>, vector<6x128xf32>
    tpu.vector_store %arg8[%c0_27, %c0_28], %68 {strides = array<i32>} : memref<6x128xf32, #tpu.memory_space<vmem>>, vector<6x128xf32>,
    return
  }
  func.func @transform_0(%arg0: i32) -> (i32, i32) {
    %c0_i32 = arith.constant 0 : i32
    %c0_i32_0 = arith.constant 0 : i32
    return %arg0, %c0_i32 : i32, i32
  }
  func.func @transform_1(%arg0: i32) -> (i32, i32) {
    %c0_i32 = arith.constant 0 : i32
    %c0_i32_0 = arith.constant 0 : i32
    return %arg0, %c0_i32 : i32, i32
  }
  func.func @transform_2(%arg0: i32) -> (i32, i32) {
    %c0_i32 = arith.constant 0 : i32
    %c0_i32_0 = arith.constant 0 : i32
    %c0_i32_1 = arith.constant 0 : i32
    return %c0_i32, %c0_i32_0 : i32, i32
  }
  func.func @transform_3(%arg0: i32) -> (i32, i32) {
    %c0_i32 = arith.constant 0 : i32
    %c0_i32_0 = arith.constant 0 : i32
    %c0_i32_1 = arith.constant 0 : i32
    return %c0_i32, %c0_i32_0 : i32, i32
  }
  func.func @transform_4(%arg0: i32) -> (i32, i32) {
    %c0_i32 = arith.constant 0 : i32
    %c0_i32_0 = arith.constant 0 : i32
    %c0_i32_1 = arith.constant 0 : i32
    return %c0_i32, %c0_i32_0 : i32, i32
  }
  func.func @transform_5(%arg0: i32) -> (i32, i32) {
    %c0_i32 = arith.constant 0 : i32
    %c0_i32_0 = arith.constant 0 : i32
    %c0_i32_1 = arith.constant 0 : i32
    return %c0_i32, %c0_i32_0 : i32, i32
  }
  func.func @transform_6(%arg0: i32) -> (i32, i32) {
    %c0_i32 = arith.constant 0 : i32
    %c0_i32_0 = arith.constant 0 : i32
    return %arg0, %c0_i32 : i32, i32
  }
  func.func @transform_7(%arg0: i32) -> (i32, i32) {
    %c0_i32 = arith.constant 0 : i32
    %c0_i32_0 = arith.constant 0 : i32
    return %arg0, %c0_i32 : i32, i32
  }
}

</mosaic_0001>

<llo_original>
// kernel: tpu_custom_call.1
$region0: #{tpu_custom_call.1}
  #allocation0 [shape = 'u32[]', space=smem, size = 0x4, offset = 0x4, fixed_abs, tag = 'smem constant byte address 0x4 - core index']
  #allocation1 [shape = 'u32[72,128]{1,0:T(1,128)}', space=vmem, size = 0x9000, scoped, tag = 'internal scratch']
  %s0 = inlined_call_operand.hbm [shape: f32[18,128], index: 0, kind: input, shape index: {}]
  %s1 = inlined_call_operand.hbm [shape: f32[6,128], index: 1, kind: input, shape index: {}]
  %s2 = inlined_call_operand.hbm [shape: f32[18,128], index: 2, kind: input, shape index: {}]
  %s3 = inlined_call_operand.hbm [shape: f32[18,128], index: 3, kind: input, shape index: {}]
  %s4 = inlined_call_operand.hbm [shape: f32[6,128], index: 4, kind: input, shape index: {}]
  %s5 = inlined_call_operand.hbm [shape: f32[6,128], index: 5, kind: input, shape index: {}]
  %s6 = inlined_call_operand.hbm [shape: f32[18,128], index: 6, kind: output, shape index: {0}]
  %s7 = inlined_call_operand.hbm [shape: f32[6,128], index: 7, kind: output, shape index: {1}]
  %8 = xla_tuple %s6, %s7
  %s9 = sld [smem:[#allocation0]]
  $region66: #{tpu_custom_call.1} parent=0
    _
  %s11 = ssub.s32 1, %s9
  %s12 = scalar_select 0, %s11, %s9
  $region1: #{tpu_custom_call.1} parent=0
    #allocation2 [shape = 'u8[12288]{0}', space=vmem, size = 0x3000, scoped, tag = 'input window, operand 0, single buffered']
    #allocation3 [shape = 's32[1]{0}', space=sflag, size = 0x4, scoped, tag = 'scoped memory for tpu_custom_call.1']
    #allocation4 [shape = 's32[1]{0}', space=sflag, size = 0x4, scoped, tag = 'scoped memory for tpu_custom_call.1']
    #allocation5 [shape = 'u8[4096]{0}', space=vmem, size = 0x1000, scoped, tag = 'input window, operand 1, single buffered']
    #allocation6 [shape = 's32[1]{0}', space=sflag, size = 0x4, scoped, tag = 'scoped memory for tpu_custom_call.1']
    #allocation7 [shape = 'u8[12288]{0}', space=vmem, size = 0x3000, scoped, tag = 'input window, operand 2, single buffered']
    #allocation8 [shape = 'u8[12288]{0}', space=vmem, size = 0x3000, scoped, tag = 'input window, operand 3, single buffered']
    #allocation9 [shape = 's32[1]{0}', space=sflag, size = 0x4, scoped, tag = 'scoped memory for tpu_custom_call.1']
    #allocation10 [shape = 'u8[4096]{0}', space=vmem, size = 0x1000, scoped, tag = 'input window, operand 4, single buffered']
    #allocation11 [shape = 'u8[4096]{0}', space=vmem, size = 0x1000, scoped, tag = 'input window, operand 5, single buffered']
    #allocation12 [shape = 's32[1]{0}', space=sflag, size = 0x4, scoped, tag = 'scoped memory for tpu_custom_call.1']
    #allocation13 [shape = 'u8[12288]{0}', space=vmem, size = 0x3000, scoped, tag = 'output window, operand 0, single buffered']
    #allocation14 [shape = 'u8[4096]{0}', space=vmem, size = 0x1000, scoped, tag = 'output window, operand 1, single buffered']
    #allocation15 [shape = 's32[1]{0}', space=sflag, size = 0x4, scoped, tag = 'scoped memory for tpu_custom_call.1']
    %13 = vsyncpa [#allocation3], 0
    %14 = vsyncpa [#allocation6], 0
    %15 = vsyncpa [#allocation9], 0
    %16 = vsyncpa [#allocation12], 0
    %17 = vsyncpa [#allocation4], 0
    %18 = vsyncpa [#allocation15], 0
    // Predicated region
    $region2: #{tpu_custom_call.1} parent=1 // pred_check
      _
    $region3: #{tpu_custom_call.1} parent=1 // pred_check_branch
      %20 = sbr.rel (0) target = $region5
    $region4: #{tpu_custom_call.1} parent=1 // pred_region
      %22 = vsyncadd [#allocation3], 0
      %s23 = sshll.u32 %s0, 4
      %s24 = int_to_ptr.hbm [resolvable:$true] %s23
      %s25 = sshll.u32 [#allocation2], 4
      %s26 = int_to_ptr.vmem [resolvable:$true] %s25
      %31 = dma.hbm_to_vmem [thread:$0]  %s24, 384, %s26, [#allocation3], 128, 128, 8
    $region5: #{tpu_custom_call.1} parent=1 // pred_fallthru
      _
    // Predicated region
    $region6: #{tpu_custom_call.1} parent=1 // pred_check
      _
    $region7: #{tpu_custom_call.1} parent=1 // pred_check_branch
      %33 = sbr.rel (0) target = $region9
    $region8: #{tpu_custom_call.1} parent=1 // pred_region
      %35 = vsyncadd [#allocation6], 0
      %s37 = sshll.u32 %s1, 4
      %s38 = int_to_ptr.hbm [resolvable:$true] %s37
      %s39 = sshll.u32 [#allocation5], 4
      %s40 = int_to_ptr.vmem [resolvable:$true] %s39
      %42 = dma.hbm_to_vmem [thread:$0]  %s38, 128, %s40, [#allocation6]
    $region9: #{tpu_custom_call.1} parent=1 // pred_fallthru
      _
    // Predicated region
    $region10: #{tpu_custom_call.1} parent=1 // pred_check
      _
    $region11: #{tpu_custom_call.1} parent=1 // pred_check_branch
      %44 = sbr.rel (0) target = $region13
    $region12: #{tpu_custom_call.1} parent=1 // pred_region
      %46 = vsyncadd [#allocation6], 0
      %s47 = sshll.u32 %s2, 4
      %s48 = int_to_ptr.hbm [resolvable:$true] %s47
      %s49 = sshll.u32 [#allocation7], 4
      %s50 = int_to_ptr.vmem [resolvable:$true] %s49
      %55 = dma.hbm_to_vmem [thread:$0]  %s48, 384, %s50, [#allocation6], 128, 128, 8
    $region13: #{tpu_custom_call.1} parent=1 // pred_fallthru
      _
    // Predicated region
    $region14: #{tpu_custom_call.1} parent=1 // pred_check
      _
    $region15: #{tpu_custom_call.1} parent=1 // pred_check_branch
      %57 = sbr.rel (0) target = $region17
    $region16: #{tpu_custom_call.1} parent=1 // pred_region
      %59 = vsyncadd [#allocation9], 0
      %s60 = sshll.u32 %s3, 4
      %s61 = int_to_ptr.hbm [resolvable:$true] %s60
      %s62 = sshll.u32 [#allocation8], 4
      %s63 = int_to_ptr.vmem [resolvable:$true] %s62
      %68 = dma.hbm_to_vmem [thread:$0]  %s61, 384, %s63, [#allocation9], 128, 128, 8
    $region17: #{tpu_custom_call.1} parent=1 // pred_fallthru
      _
    // Predicated region
    $region18: #{tpu_custom_call.1} parent=1 // pred_check
      _
    $region19: #{tpu_custom_call.1} parent=1 // pred_check_branch
      %70 = sbr.rel (0) target = $region21
    $region20: #{tpu_custom_call.1} parent=1 // pred_region
      %72 = vsyncadd [#allocation9], 0
      %s74 = sshll.u32 %s4, 4
      %s75 = int_to_ptr.hbm [resolvable:$true] %s74
      %s76 = sshll.u32 [#allocation10], 4
      %s77 = int_to_ptr.vmem [resolvable:$true] %s76
      %79 = dma.hbm_to_vmem [thread:$0]  %s75, 128, %s77, [#allocation9]
    $region21: #{tpu_custom_call.1} parent=1 // pred_fallthru
      _
    // Predicated region
    $region22: #{tpu_custom_call.1} parent=1 // pred_check
      _
    $region23: #{tpu_custom_call.1} parent=1 // pred_check_branch
      %81 = sbr.rel (0) target = $region25
    $region24: #{tpu_custom_call.1} parent=1 // pred_region
      %83 = vsyncadd [#allocation12], 0
      %s85 = sshll.u32 %s5, 4
      %s86 = int_to_ptr.hbm [resolvable:$true] %s85
      %s87 = sshll.u32 [#allocation11], 4
      %s88 = int_to_ptr.vmem [resolvable:$true] %s87
      %90 = dma.hbm_to_vmem [thread:$0]  %s86, 128, %s88, [#allocation12]
    $region25: #{tpu_custom_call.1} parent=1 // pred_fallthru
      _
    // Predicated region
    $region26: #{tpu_custom_call.1} parent=1 // pred_check
      _
    $region27: #{tpu_custom_call.1} parent=1 // pred_check_branch
      %92 = sbr.rel (0) target = $region29
    $region28: #{tpu_custom_call.1} parent=1 // pred_region
      %94 = dma.done [#allocation3], 384
    $region29: #{tpu_custom_call.1} parent=1 // pred_fallthru
      _
    // Predicated region
    $region30: #{tpu_custom_call.1} parent=1 // pred_check
      _
    $region31: #{tpu_custom_call.1} parent=1 // pred_check_branch
      %96 = sbr.rel (0) target = $region33
    $region32: #{tpu_custom_call.1} parent=1 // pred_region
      %98 = dma.done [#allocation6], 128
    $region33: #{tpu_custom_call.1} parent=1 // pred_fallthru
      _
    // Predicated region
    $region34: #{tpu_custom_call.1} parent=1 // pred_check
      _
    $region35: #{tpu_custom_call.1} parent=1 // pred_check_branch
      %100 = sbr.rel (0) target = $region37
    $region36: #{tpu_custom_call.1} parent=1 // pred_region
      %102 = dma.done [#allocation6], 384
    $region37: #{tpu_custom_call.1} parent=1 // pred_fallthru
      _
    // Predicated region
    $region38: #{tpu_custom_call.1} parent=1 // pred_check
      _
    $region39: #{tpu_custom_call.1} parent=1 // pred_check_branch
      %104 = sbr.rel (0) target = $region41
    $region40: #{tpu_custom_call.1} parent=1 // pred_region
      %106 = dma.done [#allocation9], 384
    $region41: #{tpu_custom_call.1} parent=1 // pred_fallthru
      _
    // Predicated region
    $region42: #{tpu_custom_call.1} parent=1 // pred_check
      _
    $region43: #{tpu_custom_call.1} parent=1 // pred_check_branch
      %108 = sbr.rel (0) target = $region45
    $region44: #{tpu_custom_call.1} parent=1 // pred_region
      %110 = dma.done [#allocation9], 128
    $region45: #{tpu_custom_call.1} parent=1 // pred_fallthru
      _
    // Predicated region
    $region46: #{tpu_custom_call.1} parent=1 // pred_check
      _
    $region47: #{tpu_custom_call.1} parent=1 // pred_check_branch
      %112 = sbr.rel (0) target = $region49
    $region48: #{tpu_custom_call.1} parent=1 // pred_region
      %114 = dma.done [#allocation12], 128
    $region49: #{tpu_custom_call.1} parent=1 // pred_fallthru
      _
    %v115 = vld [vmem:[#allocation2] sm:$0xff]
    %v116 = vld [vmem:[#allocation2 + $0x8] sm:$0xff]
    %v117 = vld [vmem:[#allocation2 + $0x10] sm:$0x3]
    %v118 = vld [vmem:[#allocation7] sm:$0xff]
    %v119 = vld [vmem:[#allocation7 + $0x8] sm:$0xff]
    %v120 = vld [vmem:[#allocation7 + $0x10] sm:$0x3]
    %v121 = vld [vmem:[#allocation8] sm:$0xff]
    %v122 = vld [vmem:[#allocation8 + $0x8] sm:$0xff]
    %v123 = vld [vmem:[#allocation8 + $0x10] sm:$0x3]
    %v124 = vlaneseq
    %v125 = vshrl.u32 %v124, 7
    %v126 = vadd.s32 %v125, 8
    %v127 = vadd.s32 %v125, 16
    %v128 = vlaneseq
    %v129 = vand.u32 %v128, 127
    %v130 = vmul.u32 %v125, 128
    %v131 = vmul.u32 %v126, 128
    %v132 = vmul.u32 %v127, 128
    %v133 = vadd.s32 %v130, %v129
    %v134 = vadd.s32 %v131, %v129
    %v135 = vadd.s32 %v132, %v129
    %vm136 = vcmp.lt.s32.totalorder %v133, 0
    %v137 = vsub.s32 0, %v133
    %v138 = vsel %vm136, %v137, %v133
    %v139 = vand.u32 %v138, 65535
    %v140 = vshrl.u32 %v138, 16
    %v142 = vmul.u32 %v139, 43691
    %v143 = vmul.u32 %v139, 43690
    %v144 = vmul.u32 %v140, 43691
    %v145 = vmul.u32 %v140, 43690
    %v146 = vshll.u32 %v143, 16
    %v147 = vshrl.u32 %v143, 16
    %v148 = vshll.u32 %v144, 16
    %v149 = vshrl.u32 %v144, 16
    %vm150 = vc.u32 %v142, %v146
    %v151 = vsel %vm150, 1, 0
    %v152 = vadd.s32 %v142, %v146
    %v153 = vadd.s32 %v145, %v151
    %vm154 = vc.u32 %v152, %v148
    %v155 = vsel %vm154, 1, 0
    %v156 = vadd.s32 %v152, %v148
    %v157 = vadd.s32 %v153, %v155
    %v158 = vadd.s32 %v157, %v147
    %v159 = vadd.s32 %v158, %v149
    %v160 = vshrl.u32 %v159, 1
    %v161 = vmul.u32 %v160, 3
    %v162 = vsub.s32 %v138, %v161
    %v163 = vsub.s32 0, %v162
    %v164 = vsel %vm136, %v163, %v162
    %vm165 = vcmp.lt.s32.totalorder %v134, 0
    %v166 = vsub.s32 0, %v134
    %v167 = vsel %vm165, %v166, %v134
    %v168 = vand.u32 %v167, 65535
    %v169 = vshrl.u32 %v167, 16
    %v171 = vmul.u32 %v168, 43691
    %v172 = vmul.u32 %v168, 43690
    %v173 = vmul.u32 %v169, 43691
    %v174 = vmul.u32 %v169, 43690
    %v175 = vshll.u32 %v172, 16
    %v176 = vshrl.u32 %v172, 16
    %v177 = vshll.u32 %v173, 16
    %v178 = vshrl.u32 %v173, 16
    %vm179 = vc.u32 %v171, %v175
    %v180 = vsel %vm179, 1, 0
    %v181 = vadd.s32 %v171, %v175
    %v182 = vadd.s32 %v174, %v180
    %vm183 = vc.u32 %v181, %v177
    %v184 = vsel %vm183, 1, 0
    %v185 = vadd.s32 %v181, %v177
    %v186 = vadd.s32 %v182, %v184
    %v187 = vadd.s32 %v186, %v176
    %v188 = vadd.s32 %v187, %v178
    %v189 = vshrl.u32 %v188, 1
    %v190 = vmul.u32 %v189, 3
    %v191 = vsub.s32 %v167, %v190
    %v192 = vsub.s32 0, %v191
    %v193 = vsel %vm165, %v192, %v191
    %vm194 = vcmp.lt.s32.totalorder %v135, 0
    %v195 = vsub.s32 0, %v135
    %v196 = vsel %vm194, %v195, %v135
    %v197 = vand.u32 %v196, 65535
    %v198 = vshrl.u32 %v196, 16
    %v200 = vmul.u32 %v197, 43691
    %v201 = vmul.u32 %v197, 43690
    %v202 = vmul.u32 %v198, 43691
    %v203 = vmul.u32 %v198, 43690
    %v204 = vshll.u32 %v201, 16
    %v205 = vshrl.u32 %v201, 16
    %v206 = vshll.u32 %v202, 16
    %v207 = vshrl.u32 %v202, 16
    %vm208 = vc.u32 %v200, %v204
    %v209 = vsel %vm208, 1, 0
    %v210 = vadd.s32 %v200, %v204
    %v211 = vadd.s32 %v203, %v209
    %vm212 = vc.u32 %v210, %v206
    %v213 = vsel %vm212, 1, 0
    %v214 = vadd.s32 %v210, %v206
    %v215 = vadd.s32 %v211, %v213
    %v216 = vadd.s32 %v215, %v205
    %v217 = vadd.s32 %v216, %v207
    %v218 = vshrl.u32 %v217, 1
    %v219 = vmul.u32 %v218, 3
    %v220 = vsub.s32 %v196, %v219
    %v221 = vsub.s32 0, %v220
    %v222 = vsel %vm194, %v221, %v220
    %vm223 = vcmp.ne.s32.totalorder %v164, 0
    %vm224 = vcmp.ne.s32.totalorder %v193, 0
    %vm225 = vcmp.ne.s32.totalorder %v222, 0
    %vm226 = vcmp.lt.s32.totalorder %v164, 0
    %vm227 = vcmp.lt.s32.totalorder %v193, 0
    %vm228 = vcmp.lt.s32.totalorder %v222, 0
    %vm229 = vmand %vm226, %vm223
    %vm230 = vmand %vm227, %vm224
    %vm231 = vmand %vm228, %vm225
    %v232 = vadd.s32 %v164, 3
    %v233 = vadd.s32 %v193, 3
    %v234 = vadd.s32 %v222, 3
    %v235 = vsel %vm229, %v232, %v164
    %v236 = vsel %vm230, %v233, %v193
    %v237 = vsel %vm231, %v234, %v222
    %vm238 = vcmp.eq.s32.totalorder %v235, 2
    %vm239 = vcmp.eq.s32.totalorder %v236, 2
    %vm240 = vcmp.eq.s32.totalorder %v237, 2
    %v241 = vadd.f32 %v115, 5.0
    %v242 = vadd.f32 %v116, 5.0
    %v243 = vadd.f32 %v117, 5.0
    %v244 = vsel %vm238, %v241, 1.0
    %v245 = vsel %vm239, %v242, 1.0
    %v246 = vsel %vm240, %v243, 1.0
    %v247 = vlog2.pop %v244
    %v248 = vmul.f32 %v247, 0.6931472
    %v249 = vlog2.pop %v245
    %v250 = vmul.f32 %v249, 0.6931472
    %v251 = vlog2.pop %v246
    %v252 = vmul.f32 %v251, 0.6931472
    %v253 = vsel %vm238, %v248, %v115
    %v254 = vsel %vm239, %v250, %v116
    %v255 = vsel %vm240, %v252, %v117
    %v256 = vmul.f32 %v253, %v118
    %v257 = vmul.f32 %v254, %v119
    %v258 = vmul.f32 %v255, %v120
    %v259 = vadd.f32 %v256, %v121
    %v260 = vadd.f32 %v257, %v122
    %v261 = vadd.f32 %v258, %v123
    %262 = vst [vmem:[#allocation13] sm:$0xff] %v259
    %263 = vst [vmem:[#allocation13 + $0x8] sm:$0xff] %v260
    %264 = vst [vmem:[#allocation13 + $0x10] sm:$0x3] %v261
    %v265 = vld [vmem:[#allocation5] sm:$0x3f]
    %v266 = vld [vmem:[#allocation10] sm:$0x3f]
    %v267 = vld [vmem:[#allocation11] sm:$0x3f]
    %v268 = vadd.f32 %v265, 5.0
    %v269 = vsel %vm238, %v268, 1.0
    %v270 = vlog2.pop %v269
    %v271 = vmul.f32 %v270, 0.6931472
    %v272 = vsel %vm238, %v271, %v265
    %v273 = vmul.f32 %v272, %v266
    %v274 = vadd.f32 %v273, %v267
    %275 = vst [vmem:[#allocation14] sm:$0x3f] %v274
    // Predicated region
    $region50: #{tpu_custom_call.1} parent=1 // pred_check
      _
    $region51: #{tpu_custom_call.1} parent=1 // pred_check_branch
      %277 = sbr.rel (0) target = $region53
    $region52: #{tpu_custom_call.1} parent=1 // pred_region
      %279 = vsyncadd [#allocation4], 0
      %s280 = sshll.u32 [#allocation13], 4
      %s281 = int_to_ptr.vmem [resolvable:$true] %s280
      %s282 = sshll.u32 %s6, 4
      %s283 = int_to_ptr.hbm [resolvable:$true] %s282
      %288 = dma.vmem_to_hbm [thread:$0]  %s281, 384, %s283, [#allocation4], 128, 128, 8
    $region53: #{tpu_custom_call.1} parent=1 // pred_fallthru
      _
    // Predicated region
    $region54: #{tpu_custom_call.1} parent=1 // pred_check
      _
    $region55: #{tpu_custom_call.1} parent=1 // pred_check_branch
      %290 = sbr.rel (0) target = $region57
    $region56: #{tpu_custom_call.1} parent=1 // pred_region
      %292 = vsyncadd [#allocation15], 0
      %s294 = sshll.u32 [#allocation14], 4
      %s295 = int_to_ptr.vmem [resolvable:$true] %s294
      %s296 = sshll.u32 %s7, 4
      %s297 = int_to_ptr.hbm [resolvable:$true] %s296
      %299 = dma.vmem_to_hbm [thread:$0]  %s295, 128, %s297, [#allocation15]
    $region57: #{tpu_custom_call.1} parent=1 // pred_fallthru
      _
    // Predicated region
    $region58: #{tpu_custom_call.1} parent=1 // pred_check
      _
    $region59: #{tpu_custom_call.1} parent=1 // pred_check_branch
      %301 = sbr.rel (0) target = $region61
    $region60: #{tpu_custom_call.1} parent=1 // pred_region
      %303 = dma.done [#allocation4], 384
    $region61: #{tpu_custom_call.1} parent=1 // pred_fallthru
      _
    // Predicated region
    $region62: #{tpu_custom_call.1} parent=1 // pred_check
      _
    $region63: #{tpu_custom_call.1} parent=1 // pred_check_branch
      %305 = sbr.rel (0) target = $region65
    $region64: #{tpu_custom_call.1} parent=1 // pred_region
      %307 = dma.done [#allocation15], 128
    $region65: #{tpu_custom_call.1} parent=1 // pred_fallthru
      _
    %308 = vsyncpa [#allocation3], 1
    %309 = vsyncpa [#allocation6], 1
    %310 = vsyncpa [#allocation9], 1
    %311 = vsyncpa [#allocation12], 1
    %312 = vsyncpa [#allocation4], 1
    %313 = vsyncpa [#allocation15], 1

</llo_original>
